<compile_context>
chip_gen: v7x
topology: tpu7x:2x2x1
jax: 0.10.0
libtpu: 0.0.40
codegen_flags: <defaults>
</compile_context>

<pallas_src>
import jax
import jax.numpy as jnp
from jax import lax
from jax.experimental import pallas as pl
from jax.experimental.pallas import tpu as pltpu


def _make_kernel(B, C, TB):
    """Kernel closed over static batch size B, classes C and batch tile TB."""

    def kernel(tc_ref, td_ref, y_ref, yt_ref, out_ref):
        i = pl.program_id(0)
        start = i * TB
        if TB % 8 == 0:
            start = pl.multiple_of(start, 8)

        # Hoisted once per tile and shared by both CE terms (JAX does not CSE iotas).
        col = lax.broadcasted_iota(jnp.int32, (TB, C), 1)            # (TB, C) class ids
        row = i * TB + lax.broadcasted_iota(jnp.int32, (TB, 1), 0)   # (TB, 1) global rows
        valid = row < B                                              # mask padded remainder rows

        def ce_partial_sum(logits_ref, labels):
            # Upcast in-VMEM (inputs may be bf16/f16 streamed at native width from HBM).
            x = logits_ref[...].astype(jnp.float32)                  # (TB, C)
            m = jnp.max(x, axis=-1, keepdims=True)                   # (TB, 1)
            shifted = x - m                                          # raw f32 copy dies here
            # Keep select semantics (NOT multiply-by-mask): padded rows may hold garbage.
            tgt = jnp.sum(jnp.where(col == labels, shifted, 0.0),
                          axis=-1, keepdims=True)                    # (TB, 1) shifted target logit
            lse = jnp.log(jnp.sum(jnp.exp(shifted), axis=-1, keepdims=True))
            per_example = lse - tgt                                  # == logsumexp(x) - x[label]
            return jnp.sum(jnp.where(valid, per_example, 0.0))       # scalar

        labels_cls = y_ref[pl.ds(start, TB), :]    # (TB, 1) slice of the resident label block
        labels_dst = yt_ref[pl.ds(start, TB), :]

        tile_sum = ce_partial_sum(tc_ref, labels_cls) + ce_partial_sum(td_ref, labels_dst)
        out_ref[...] = jnp.reshape(tile_sum, (1, 1))   # per-tile partial sum

    return kernel


def _choose_tile_and_vmem_limit(B, C, itemsize):
    """Pick the batch tile from C/dtype against this generation's VMEM, plus a vmem limit."""
    try:
        vmem_cap = int(getattr(pltpu.get_tpu_info(), "vmem_capacity_bytes", 64 << 20))
    except Exception:
        vmem_cap = 64 << 20   # conservative (v7x-sized) fallback; safe on all generations

    # Peak VMEM bytes per batch row:
    #   2 logits inputs x 2 pipeline buffers at native width, plus ~4 f32 rows of headroom
    #   for the in-kernel upcast / shifted / exp temporaries.
    per_row = 2 * 2 * C * itemsize + 4 * C * 4
    budget = vmem_cap // 2                 # stay well inside physical VMEM (64 MiB on v7x)
    tb = budget // max(per_row, 1)
    tb = max(8, min(2048, (tb // 8) * 8))
    if tb >= B:
        tb = B                             # single full-batch block (block == full dim is legal)

    nt = pl.cdiv(B, tb)
    bp = nt * tb
    stream = 2 * 2 * tb * C * itemsize                    # double-buffered logits blocks
    labels = 2 * 2 * ((bp + 7) // 8) * 8 * 128 * 4        # layout-padded resident labels (generous)
    interm = 4 * tb * C * 4                                # f32 temporaries slack
    vmem_limit = stream + labels + interm + (8 << 20)
    vmem_limit = max(vmem_limit, 32 << 20)
    vmem_limit = min(vmem_limit, int(vmem_cap * 0.9))
    return int(tb), int(vmem_limit)


def distillation_loss_vit(token_class, token_dist, y, y_teacher, *, tile_b=None):
    """Pallas wrapper. token_class/token_dist: (B, C) float (any fp dtype); y/y_teacher: (B,) int.

    tile_b, if given and < B, should be a multiple of 8.
    """
    B, C = token_class.shape
    itemsize = jnp.dtype(token_class.dtype).itemsize
    auto_tb, vmem_limit = _choose_tile_and_vmem_limit(B, C, itemsize)
    TB = int(tile_b) if tile_b is not None else auto_tb
    NT = pl.cdiv(B, TB)
    Bp = NT * TB

    # Grid-resident labels: one (Bp, 1) int32 block (constant index_map), zero-padded so the
    # in-kernel pl.ds slice of the last (possibly partial) tile stays in bounds.
    y2 = jnp.zeros((Bp, 1), jnp.int32).at[:B, 0].set(y.astype(jnp.int32))
    yt2 = jnp.zeros((Bp, 1), jnp.int32).at[:B, 0].set(y_teacher.astype(jnp.int32))

    kernel = _make_kernel(B, C, TB)

    partials = pl.pallas_call(
        kernel,
        out_shape=jax.ShapeDtypeStruct((NT, 1), jnp.float32),
        grid=(NT,),
        in_specs=[
            pl.BlockSpec((TB, C), lambda i: (i, 0)),   # token_class logits (streamed)
            pl.BlockSpec((TB, C), lambda i: (i, 0)),   # token_dist logits (streamed)
            pl.BlockSpec((Bp, 1), lambda i: (0, 0)),   # y         (grid-resident)
            pl.BlockSpec((Bp, 1), lambda i: (0, 0)),   # y_teacher (grid-resident)
        ],
        out_specs=pl.BlockSpec((1, 1), lambda i: (i, 0)),   # one partial sum per tile
        compiler_params=pltpu.CompilerParams(
            dimension_semantics=("parallel",),               # v7x: tiles split across both TCs
            vmem_limit_bytes=vmem_limit),
    )(token_class, token_dist, y2, yt2)

    # 0.5 * mean(ce_cls) + 0.5 * mean(ce_dst) == (sum_cls + sum_dst) * 0.5 / B
    return jnp.sum(partials) * jnp.float32(0.5 / B)


def _reference_loss(token_class, token_dist, y, y_teacher):
    """Pure-JAX reference (0.5*CE + 0.5*CE with mean reduction)."""
    def ce(logits, labels):
        logp = jax.nn.log_softmax(logits.astype(jnp.float32), axis=-1)
        nll = -jnp.take_along_axis(logp, labels[:, None].astype(jnp.int32),
                                   axis=-1)[:, 0]
        return jnp.mean(nll)
    return 0.5 * ce(token_class, y) + 0.5 * ce(token_dist, y_teacher)


if __name__ == "__main__":
    key = jax.random.PRNGKey(0)
    k1, k2, k3, k4, k5, k6, k7, k8 = jax.random.split(key, 8)

    # Case 1: small single-tile shape (TB == B), f32 logits.
    B, C = 8, 32
    token_class = jax.random.normal(k1, (B, C), dtype=jnp.float32)
    token_dist = jax.random.normal(k2, (B, C), dtype=jnp.float32)
    y = jax.random.randint(k3, (B,), 0, C, dtype=jnp.int32)
    y_teacher = jax.random.randint(k4, (B,), 0, C, dtype=jnp.int32)

    loss = distillation_loss_vit(token_class, token_dist, y, y_teacher)
    jax.block_until_ready(loss)
    ref = _reference_loss(token_class, token_dist, y, y_teacher)
    assert jnp.allclose(loss, ref, rtol=1e-5, atol=1e-5), (loss, ref)

    # Case 2: multi-tile batch with a partial last tile (exercises the parallel grid,
    # per-tile partial outputs, resident-label slicing and the remainder-row mask),
    # bf16 logits streamed natively.
    B2, C2 = 20, 32
    tc2 = jax.random.normal(k5, (B2, C2), dtype=jnp.bfloat16)
    td2 = jax.random.normal(k6, (B2, C2), dtype=jnp.bfloat16)
    yb2 = jax.random.randint(k7, (B2,), 0, C2, dtype=jnp.int32)
    ytb2 = jax.random.randint(k8, (B2,), 0, C2, dtype=jnp.int32)

    loss2 = distillation_loss_vit(tc2, td2, yb2, ytb2, tile_b=8)
    jax.block_until_ready(loss2)
    ref2 = _reference_loss(tc2, td2, yb2, ytb2)
    assert jnp.allclose(loss2, ref2, rtol=1e-4, atol=1e-4), (loss2, ref2)

    print("KERNEL_OK")
</pallas_src>

<mosaic_0001>
module attributes {stable_mosaic.version = 11 : i64} {
  func.func @kernel(%arg0: i32, %arg1: memref<8x32xf32, #tpu.memory_space<vmem>>, %arg2: memref<8x32xf32, #tpu.memory_space<vmem>>, %arg3: memref<8x1xi32, #tpu.memory_space<vmem>>, %arg4: memref<8x1xi32, #tpu.memory_space<vmem>>, %arg5: memref<1x1xf32, #tpu.memory_space<vmem>>) attributes {dimension_semantics = [#tpu.dimension_semantics<parallel>], iteration_bounds = array<i64: 1>, scalar_prefetch = 0 : i64, scratch_operands = 0 : i64, tpu.core_type = #tpu.core_type<tc>, window_params = [{transform_indices = @transform_0, window_bounds = array<i64: 8, 32>}, {transform_indices = @transform_1, window_bounds = array<i64: 8, 32>}, {pipeline_mode = #tpu.pipeline_mode<synchronous>, transform_indices = @transform_2, window_bounds = array<i64: 8, 1>}, {pipeline_mode = #tpu.pipeline_mode<synchronous>, transform_indices = @transform_3, window_bounds = array<i64: 8, 1>}, {transform_indices = @transform_4, window_bounds = array<i64: 1, 1>}]} {
    %c8_i32 = arith.constant 8 : i32
    %0 = arith.muli %arg0, %c8_i32 : i32
    %1 = tpu.assume_multiple %0, 8 : i32
    %2 = tpu.iota {dimensions = array<i32: 1>} : vector<8x32xi32>
    %c8_i32_0 = arith.constant 8 : i32
    %3 = arith.muli %arg0, %c8_i32_0 : i32
    %4 = tpu.iota {dimensions = array<i32: 0>} : vector<8x1xi32>
    %5 = vector.broadcast %3 : i32 to vector<8x1xi32>
    %6 = arith.addi %5, %4 : vector<8x1xi32>
    %c8_i32_1 = arith.constant 8 : i32
    %7 = vector.broadcast %c8_i32_1 : i32 to vector<8x1xi32>
    %8 = arith.cmpi slt, %6, %7 : vector<8x1xi32>
    %9 = arith.index_cast %1 : i32 to index
    %c0 = arith.constant 0 : index
    %10 = vector.load %arg3[%9, %c0] : memref<8x1xi32, #tpu.memory_space<vmem>>, vector<8x1xi32>
    %11 = arith.index_cast %1 : i32 to index
    %c0_2 = arith.constant 0 : index
    %12 = vector.load %arg4[%11, %c0_2] : memref<8x1xi32, #tpu.memory_space<vmem>>, vector<8x1xi32>
    %c0_3 = arith.constant 0 : index
    %c0_4 = arith.constant 0 : index
    %13 = vector.load %arg1[%c0_3, %c0_4] : memref<8x32xf32, #tpu.memory_space<vmem>>, vector<8x32xf32>
    %cst = arith.constant dense<0xFF800000> : vector<8xf32>
    %14 = vector.multi_reduction <maximumf>, %13, %cst [1] : vector<8x32xf32> to vector<8xf32>
    %15 = vector.shape_cast %14 : vector<8xf32> to vector<8x1xf32>
    %16 = vector.broadcast %15 : vector<8x1xf32> to vector<8x32xf32>
    %17 = arith.subf %13, %16 : vector<8x32xf32>
    %18 = vector.broadcast %10 : vector<8x1xi32> to vector<8x32xi32>
    %19 = arith.cmpi eq, %2, %18 : vector<8x32xi32>
    %cst_5 = arith.constant 0.000000e+00 : f32
    %20 = vector.broadcast %cst_5 : f32 to vector<8x32xf32>
    %21 = arith.select %19, %17, %20 : vector<8x32xi1>, vector<8x32xf32>
    %cst_6 = arith.constant dense<0.000000e+00> : vector<8xf32>
    %22 = vector.multi_reduction <add>, %21, %cst_6 [1] : vector<8x32xf32> to vector<8xf32>
    %23 = vector.shape_cast %22 : vector<8xf32> to vector<8x1xf32>
    %24 = math.exp %17 : vector<8x32xf32>
    %cst_7 = arith.constant dense<0.000000e+00> : vector<8xf32>
    %25 = vector.multi_reduction <add>, %24, %cst_7 [1] : vector<8x32xf32> to vector<8xf32>
    %26 = vector.shape_cast %25 : vector<8xf32> to vector<8x1xf32>
    %27 = math.log %26 : vector<8x1xf32>
    %28 = arith.subf %27, %23 : vector<8x1xf32>
    %cst_8 = arith.constant 0.000000e+00 : f32
    %29 = vector.broadcast %cst_8 : f32 to vector<8x1xf32>
    %30 = arith.select %8, %28, %29 : vector<8x1xi1>, vector<8x1xf32>
    %31 = vector.shape_cast %30 : vector<8x1xf32> to vector<1x8x1xf32>
    %cst_9 = arith.constant dense<0.000000e+00> : vector<1xf32>
    %32 = vector.multi_reduction <add>, %31, %cst_9 [1, 2] : vector<1x8x1xf32> to vector<1xf32>
    %33 = vector.shape_cast %32 : vector<1xf32> to vector<1x1x1xf32>
    %34 = vector.extract %33[0, 0, 0] : f32 from vector<1x1x1xf32>
    %c0_10 = arith.constant 0 : index
    %c0_11 = arith.constant 0 : index
    %35 = vector.load %arg2[%c0_10, %c0_11] : memref<8x32xf32, #tpu.memory_space<vmem>>, vector<8x32xf32>
    %cst_12 = arith.constant dense<0xFF800000> : vector<8xf32>
    %36 = vector.multi_reduction <maximumf>, %35, %cst_12 [1] : vector<8x32xf32> to vector<8xf32>
    %37 = vector.shape_cast %36 : vector<8xf32> to vector<8x1xf32>
    %38 = vector.broadcast %37 : vector<8x1xf32> to vector<8x32xf32>
    %39 = arith.subf %35, %38 : vector<8x32xf32>
    %40 = vector.broadcast %12 : vector<8x1xi32> to vector<8x32xi32>
    %41 = arith.cmpi eq, %2, %40 : vector<8x32xi32>
    %cst_13 = arith.constant 0.000000e+00 : f32
    %42 = vector.broadcast %cst_13 : f32 to vector<8x32xf32>
    %43 = arith.select %41, %39, %42 : vector<8x32xi1>, vector<8x32xf32>
    %cst_14 = arith.constant dense<0.000000e+00> : vector<8xf32>
    %44 = vector.multi_reduction <add>, %43, %cst_14 [1] : vector<8x32xf32> to vector<8xf32>
    %45 = vector.shape_cast %44 : vector<8xf32> to vector<8x1xf32>
    %46 = math.exp %39 : vector<8x32xf32>
    %cst_15 = arith.constant dense<0.000000e+00> : vector<8xf32>
    %47 = vector.multi_reduction <add>, %46, %cst_15 [1] : vector<8x32xf32> to vector<8xf32>
    %48 = vector.shape_cast %47 : vector<8xf32> to vector<8x1xf32>
    %49 = math.log %48 : vector<8x1xf32>
    %50 = arith.subf %49, %45 : vector<8x1xf32>
    %cst_16 = arith.constant 0.000000e+00 : f32
    %51 = vector.broadcast %cst_16 : f32 to vector<8x1xf32>
    %52 = arith.select %8, %50, %51 : vector<8x1xi1>, vector<8x1xf32>
    %53 = vector.shape_cast %52 : vector<8x1xf32> to vector<1x8x1xf32>
    %cst_17 = arith.constant dense<0.000000e+00> : vector<1xf32>
    %54 = vector.multi_reduction <add>, %53, %cst_17 [1, 2] : vector<1x8x1xf32> to vector<1xf32>
    %55 = vector.shape_cast %54 : vector<1xf32> to vector<1x1x1xf32>
    %56 = vector.extract %55[0, 0, 0] : f32 from vector<1x1x1xf32>
    %57 = arith.addf %34, %56 : f32
    %58 = vector.broadcast %57 : f32 to vector<1x1xf32>
    %c0_18 = arith.constant 0 : index
    %c0_19 = arith.constant 0 : index
    %59 = vector.load %arg5[%c0_18, %c0_19] : memref<1x1xf32, #tpu.memory_space<vmem>>, vector<1x1xf32>
    tpu.vector_store %arg5[%c0_18, %c0_19], %58 {strides = array<i32>} : memref<1x1xf32, #tpu.memory_space<vmem>>, vector<1x1xf32>,
    return
  }
  func.func @transform_0(%arg0: i32) -> (i32, i32) {
    %c0_i32 = arith.constant 0 : i32
    %c0_i32_0 = arith.constant 0 : i32
    return %arg0, %c0_i32 : i32, i32
  }
  func.func @transform_1(%arg0: i32) -> (i32, i32) {
    %c0_i32 = arith.constant 0 : i32
    %c0_i32_0 = arith.constant 0 : i32
    return %arg0, %c0_i32 : i32, i32
  }
  func.func @transform_2(%arg0: i32) -> (i32, i32) {
    %c0_i32 = arith.constant 0 : i32
    %c0_i32_0 = arith.constant 0 : i32
    %c0_i32_1 = arith.constant 0 : i32
    return %c0_i32, %c0_i32_0 : i32, i32
  }
  func.func @transform_3(%arg0: i32) -> (i32, i32) {
    %c0_i32 = arith.constant 0 : i32
    %c0_i32_0 = arith.constant 0 : i32
    %c0_i32_1 = arith.constant 0 : i32
    return %c0_i32, %c0_i32_0 : i32, i32
  }
  func.func @transform_4(%arg0: i32) -> (i32, i32) {
    %c0_i32 = arith.constant 0 : i32
    %c0_i32_0 = arith.constant 0 : i32
    return %arg0, %c0_i32 : i32, i32
  }
}

</mosaic_0001>

<llo_original>
// kernel: tpu_custom_call.1
$region0: #{tpu_custom_call.1}
  #allocation0 [shape = 'u32[]', space=smem, size = 0x4, offset = 0x4, fixed_abs, tag = 'smem constant byte address 0x4 - core index']
  #allocation1 [shape = 'u32[144,128]{1,0:T(1,128)}', space=vmem, size = 0x12000, scoped, tag = 'internal scratch']
  %s0 = inlined_call_operand.vmem [shape: f32[8,32], index: 0, kind: input, shape index: {}]
  %s1 = inlined_call_operand.vmem [shape: f32[8,32], index: 1, kind: input, shape index: {}]
  %s2 = inlined_call_operand.vmem [shape: s32[8,1], index: 2, kind: input, shape index: {}]
  %s3 = inlined_call_operand.vmem [shape: s32[8,1], index: 3, kind: input, shape index: {}]
  %s4 = inlined_call_operand.hbm [shape: f32[1,1], index: 4, kind: output, shape index: {}]
  %s5 = sld [smem:[#allocation0]]
  $region26: #{tpu_custom_call.1} parent=0
    _
  %s7 = ssub.s32 1, %s5
  %s8 = scalar_select 0, %s7, %s5
  $region1: #{tpu_custom_call.1} parent=0
    #allocation2 [shape = 'u8[512]{0}', space=vmem, size = 0x400, scoped, tag = 'output window, operand 0, single buffered']
    #allocation3 [shape = 's32[1]{0}', space=sflag, size = 0x4, scoped, tag = 'scoped memory for tpu_custom_call.1']
    %9 = vsyncpa [#allocation3], 0
    // Predicated region
    $region2: #{tpu_custom_call.1} parent=1 // pred_check
      _
    $region3: #{tpu_custom_call.1} parent=1 // pred_check_branch
      %11 = sbr.rel (0) target = $region5
    $region4: #{tpu_custom_call.1} parent=1 // pred_region
      _
    $region5: #{tpu_custom_call.1} parent=1 // pred_fallthru
      _
    // Predicated region
    $region6: #{tpu_custom_call.1} parent=1 // pred_check
      _
    $region7: #{tpu_custom_call.1} parent=1 // pred_check_branch
      %13 = sbr.rel (0) target = $region9
    $region8: #{tpu_custom_call.1} parent=1 // pred_region
      _
    $region9: #{tpu_custom_call.1} parent=1 // pred_fallthru
      _
    // Predicated region
    $region10: #{tpu_custom_call.1} parent=1 // pred_check
      _
    $region11: #{tpu_custom_call.1} parent=1 // pred_check_branch
      %15 = sbr.rel (0) target = $region13
    $region12: #{tpu_custom_call.1} parent=1 // pred_region
      _
    $region13: #{tpu_custom_call.1} parent=1 // pred_fallthru
      _
    // Predicated region
    $region14: #{tpu_custom_call.1} parent=1 // pred_check
      _
    $region15: #{tpu_custom_call.1} parent=1 // pred_check_branch
      %17 = sbr.rel (0) target = $region17
    $region16: #{tpu_custom_call.1} parent=1 // pred_region
      _
    $region17: #{tpu_custom_call.1} parent=1 // pred_fallthru
      _
    %s18 = smul.u32 0, 8
    %v19 = vlaneseq
    %v20 = vand.u32 %v19, 127
    %v21 = vlaneseq
    %v22 = vshrl.u32 %v21, 7
    %v23 = vstv %s18
    %v24 = vadd.s32 %v23, %v22
    %vm25 = vcmp.lt.s32.totalorder %v24, 8
    %s26 = scalar_lea.vmem %s2, %s18
    %v27 = vld [vmem:[%s26] sm:$0xff]
    %s28 = scalar_lea.vmem %s3, %s18
    %v29 = vld [vmem:[%s28] sm:$0xff]
    %v30 = vld [vmem:[%s0] sm:$0xff]
    %vm31 = vcmask 261120
    %v32 = vsel %vm31, %v30, -inf
    %33 = vmax.xlane.f32.xlu0 %v32
    %v34 = vpop.xlane.xlu0 %33
    %v35 = vsub.f32 %v30, %v34
    %36 = vset.pattern.permute.xlu0 0
    %37 = vperm.xlu0 %36, %v27
    %v38 = vpop.permute.xlu0 %37
    %vm39 = vcmp.eq.s32.totalorder %v20, %v38
    %v40 = vsel %vm39, %v35, 0.0
    %v41 = vsel %vm31, %v40, 0.0
    %42 = vadd.xlane.f32.xlu0 %v41
    %v43 = vpop.xlane.xlu0 %42
    %v44 = vmul.f32 %v35, 1.442695
    %v45 = vpow.pop %v44
    %v46 = vsel %vm31, %v45, 0.0
    %47 = vadd.xlane.f32.xlu0 %v46
    %v48 = vpop.xlane.xlu0 %47
    %v49 = vlog2.pop %v48
    %v50 = vmul.f32 %v49, 0.6931472
    %v51 = vsub.f32 %v50, %v43
    %v52 = vsel %vm25, %v51, 0.0
    %vm53 = vcmask 7168
    %v54 = vsel %vm53, %v52, 0.0
    %55 = vadd.xlane.f32.xlu0 %v54
    %v56 = vpop.xlane.xlu0 %55
    %v57 = vrot.slane %v56, 4
    %v58 = vadd.f32 %v56, %v57
    %v59 = vrot.slane %v58, 2
    %v60 = vadd.f32 %v58, %v59
    %v61 = vrot.slane %v60, 1
    %v62 = vadd.f32 %v60, %v61
    %s63 = vtos %v62
    %v64 = vld [vmem:[%s1] sm:$0xff]
    %v65 = vsel %vm31, %v64, -inf
    %66 = vmax.xlane.f32.xlu0 %v65
    %v67 = vpop.xlane.xlu0 %66
    %v68 = vsub.f32 %v64, %v67
    %69 = vset.pattern.permute.xlu0 0
    %70 = vperm.xlu0 %69, %v29
    %v71 = vpop.permute.xlu0 %70
    %vm72 = vcmp.eq.s32.totalorder %v20, %v71
    %v73 = vsel %vm72, %v68, 0.0
    %v74 = vsel %vm31, %v73, 0.0
    %75 = vadd.xlane.f32.xlu0 %v74
    %v76 = vpop.xlane.xlu0 %75
    %v77 = vmul.f32 %v68, 1.442695
    %v78 = vpow.pop %v77
    %v79 = vsel %vm31, %v78, 0.0
    %80 = vadd.xlane.f32.xlu0 %v79
    %v81 = vpop.xlane.xlu0 %80
    %v82 = vlog2.pop %v81
    %v83 = vmul.f32 %v82, 0.6931472
    %v84 = vsub.f32 %v83, %v76
    %v85 = vsel %vm25, %v84, 0.0
    %v86 = vsel %vm53, %v85, 0.0
    %87 = vadd.xlane.f32.xlu0 %v86
    %v88 = vpop.xlane.xlu0 %87
    %v89 = vrot.slane %v88, 4
    %v90 = vadd.f32 %v88, %v89
    %v91 = vrot.slane %v90, 2
    %v92 = vadd.f32 %v90, %v91
    %v93 = vrot.slane %v92, 1
    %v94 = vadd.f32 %v92, %v93
    %s95 = vtos %v94
    %s96 = sadd.f32 %s63, %s95
    %v97 = vstv %s96
    %vm98 = vcmask 0
    %99 = vst.msk [vmem:[#allocation2] sm:$0x1] %vm98, %v97
    // Predicated region
    $region18: #{tpu_custom_call.1} parent=1 // pred_check
      _
    $region19: #{tpu_custom_call.1} parent=1 // pred_check_branch
      %101 = sbr.rel (0) target = $region21
    $region20: #{tpu_custom_call.1} parent=1 // pred_region
      %s103 = ssub.s32 16, 16
      %104 = vsyncadd [#allocation3], %s103
      %s106 = sshll.u32 [#allocation2], 4
      %s107 = int_to_ptr.vmem [resolvable:$true] %s106
      %109 = dma.vmem_to_hbm [thread:$0]  %s107, 16, %s4, [#allocation3]
    $region21: #{tpu_custom_call.1} parent=1 // pred_fallthru
      _
    // Predicated region
    $region22: #{tpu_custom_call.1} parent=1 // pred_check
      _
    $region23: #{tpu_custom_call.1} parent=1 // pred_check_branch
      %111 = sbr.rel (0) target = $region25
    $region24: #{tpu_custom_call.1} parent=1 // pred_region
      %112 = dma.done [#allocation3], 16
    $region25: #{tpu_custom_call.1} parent=1 // pred_fallthru
      _
    %113 = vsyncpa [#allocation3], 1

</llo_original>
